<compile_context>
chip_gen: v7x
topology: tpu7x:2x2x1
jax: 0.10.0
libtpu: 0.0.40
codegen_flags: <defaults>
</compile_context>

<pallas_src>
import functools

import jax
import jax.numpy as jnp
from jax import lax
from jax.experimental import pallas as pl
from jax.experimental.pallas import tpu as pltpu

LEAKY_SLOPE = 0.01  # nn.LeakyReLU default
LANE = 128


def _leaky_relu(x):
    return jnp.where(x >= 0, x, LEAKY_SLOPE * x)


def _pick_hw_chunk(hw, target=128):
    """Largest multiple-of-8 divisor of hw that is <= target (else hw itself)."""
    if hw <= target:
        return hw
    c = (target // 8) * 8
    while c >= 8:
        if hw % c == 0:
            return c
        c -= 8
    return hw


def _gateconv_kernel(p_ref, wc_ref, bc_ref, w1_ref, b1_ref, w2_ref, b2_ref,
                     feat_ref, out_ref, *, hw_chunk):
    """One batch-block per grid step: fused im2col-conv -> lrelu -> pool -> MLP."""
    B, HW, Kc = p_ref.shape          # (block_b, H*W, 9*Cin)
    Cfp = wc_ref.shape[-1]           # 128 (conv channels, lane padded)
    n_chunks = HW // hw_chunk

    wc = wc_ref[...]                 # (Kc, 128) bf16 — hoisted, reused per chunk
    bc = bc_ref[...]                 # (1, 128) f32
    inv_hw = jnp.float32(1.0 / HW)

    # Fused conv (single im2col matmul per chunk) + bias + LeakyReLU +
    # pool-accumulate.  Chunking over HW keeps the f32 working set at one
    # (B*hw_chunk, 128) tile instead of the full (B*HW, 128) slab.
    def chunk_body(c, pooled_sum):
        start = pl.multiple_of(c * hw_chunk, hw_chunk)
        rows = p_ref[:, pl.ds(start, hw_chunk), :]              # (B, ch, Kc) bf16
        acc = jnp.dot(rows.reshape(B * hw_chunk, Kc), wc,
                      preferred_element_type=jnp.float32)       # (B*ch, 128) f32
        acc = _leaky_relu(acc + bc)
        # single reshape + sublane reduce (no per-image slice/concat loop)
        return pooled_sum + jnp.sum(acc.reshape(B, hw_chunk, Cfp), axis=1)

    pooled = lax.fori_loop(0, n_chunks, chunk_body,
                           jnp.zeros((B, Cfp), jnp.float32),
                           unroll=True) * inv_hw                # (B, 128) f32

    # layer1: Linear(11 -> 128) + LeakyReLU (zero-padded w1 rows keep the
    # lane padding of `pooled` exact), batched with M = B.
    h = jnp.dot(pooled.astype(jnp.bfloat16), w1_ref[...],
                preferred_element_type=jnp.float32)
    h = _leaky_relu(h + b1_ref[...])
    feat_ref[...] = h.astype(feat_ref.dtype)                    # (B, 128) lane-dense

    # head: Linear(128 -> NC), NC zero-padded to 128 lanes.
    o = jnp.dot(h.astype(jnp.bfloat16), w2_ref[...],
                preferred_element_type=jnp.float32) + b2_ref[...]
    out_ref[...] = o.astype(out_ref.dtype)                      # (B, 128) lane-dense


@functools.partial(jax.jit, static_argnames=("block_b",))
def gateconv_forward(x_nchw, params, *, block_b=32):
    """x_nchw: (N, Cin, H, W) float32. Returns (features (N,128), out (N,NC))."""
    wc, bc, w1, b1, w2, b2 = params
    N, Cin, H, W = x_nchw.shape
    Cf = wc.shape[-1]            # 11
    Hd = w1.shape[-1]            # 128
    NC = w2.shape[-1]            # num_classes
    HW = H * W
    Kc = 9 * Cin                 # im2col contraction depth (NOT padded to 128)
    Cfp = LANE * pl.cdiv(Cf, LANE)   # conv channels padded to 128 lanes
    NCp = LANE * pl.cdiv(NC, LANE)   # head output padded to 128 lanes

    # ---- wrapper-side im2col: NCHW -> NHWC, zero-pad, 9 shifted slices ----
    xh = jnp.transpose(x_nchw, (0, 2, 3, 1))
    xp = jnp.pad(xh, ((0, 0), (1, 1), (1, 1), (0, 0)))
    patches = jnp.concatenate(
        [xp[:, kh:kh + H, kw:kw + W, :] for kh in range(3) for kw in range(3)],
        axis=-1).reshape(N, HW, Kc)                    # K order = (kh, kw, cin)
    patches = patches.astype(jnp.bfloat16)             # bf16 operands, f32 accum

    # ---- lane-pad parameters with zeros (exactly preserves the math) ----
    wc_flat = jnp.pad(wc.reshape(Kc, Cf),
                      ((0, 0), (0, Cfp - Cf))).astype(jnp.bfloat16)   # (Kc, 128)
    bc_p = jnp.pad(bc, ((0, 0), (0, Cfp - Cf)))                       # (1, 128) f32
    w1_p = jnp.pad(w1, ((0, Cfp - Cf), (0, 0))).astype(jnp.bfloat16)  # (128, 128)
    b1_p = b1                                                         # (1, 128) f32
    w2_p = jnp.pad(w2, ((0, 0), (0, NCp - NC))).astype(jnp.bfloat16)  # (128, 128)
    b2_p = jnp.pad(b2, ((0, 0), (0, NCp - NC)))                       # (1, 128) f32

    # ---- batch-block the grid (amortize ~0.35us/step) ----
    bb = min(block_b, N)
    if bb < N:
        bb = max(8, (bb // 8) * 8)
    nblk = pl.cdiv(N, bb)
    # v7x has 2 TensorCores: force >= 2 parallel batch blocks for larger N so
    # both cores get work (harmless no-op on single-TC v5e/v6e).
    if nblk == 1 and N > 8:
        bb = 8 * pl.cdiv(pl.cdiv(N, 2), 8)
        nblk = pl.cdiv(N, bb)
    Np = nblk * bb
    if Np != N:
        patches = jnp.pad(patches, ((0, Np - N), (0, 0), (0, 0)))

    hw_chunk = _pick_hw_chunk(HW)

    # ---- explicit VMEM budget (Kc=36 lane-pads to 128 inside VMEM) ----
    patch_tile = bb * HW * LANE * 2                  # bf16 patches tile (lane padded)
    weight_bytes = (Kc * Cfp + Cfp * Hd + Hd * NCp) * 2 + (Cfp + Hd + NCp) * 4
    out_tile = bb * (Hd + NCp) * 4
    chunk_acc = bb * hw_chunk * Cfp * 4              # transient fused-chunk slab
    vmem_est = 2 * (patch_tile + weight_bytes + out_tile + chunk_acc) + (4 << 20)
    vmem_limit = int(max(min(vmem_est, 64 << 20), 32 << 20))  # fits v7x 64 MiB

    grid_spec = pltpu.PrefetchScalarGridSpec(
        num_scalar_prefetch=0,
        grid=(nblk,),
        in_specs=[
            pl.BlockSpec((bb, HW, Kc), lambda n: (n, 0, 0)),   # im2col patches
            pl.BlockSpec((Kc, Cfp), lambda n: (0, 0)),          # conv weight
            pl.BlockSpec((1, Cfp), lambda n: (0, 0)),           # conv bias
            pl.BlockSpec((Cfp, Hd), lambda n: (0, 0)),          # layer1 weight
            pl.BlockSpec((1, Hd), lambda n: (0, 0)),            # layer1 bias
            pl.BlockSpec((Hd, NCp), lambda n: (0, 0)),          # head weight
            pl.BlockSpec((1, NCp), lambda n: (0, 0)),           # head bias
        ],
        out_specs=[
            pl.BlockSpec((bb, Hd), lambda n: (n, 0)),           # features
            pl.BlockSpec((bb, NCp), lambda n: (n, 0)),          # logits (padded)
        ],
    )

    feats, out = pl.pallas_call(
        functools.partial(_gateconv_kernel, hw_chunk=hw_chunk),
        out_shape=(
            jax.ShapeDtypeStruct((Np, Hd), jnp.float32),
            jax.ShapeDtypeStruct((Np, NCp), jnp.float32),
        ),
        grid_spec=grid_spec,
        compiler_params=pltpu.CompilerParams(
            dimension_semantics=("parallel",),
            vmem_limit_bytes=vmem_limit),
    )(patches, wc_flat, bc_p, w1_p, b1_p, w2_p, b2_p)

    # Padded batch rows carry garbage (bias pushed through the MLP); drop them.
    return feats[:N], out[:N, :NC]


def init_params(key, in_channels, num_classes, feat_channels=11, hidden=128):
    ks = jax.random.split(key, 6)
    wc = 0.1 * jax.random.normal(ks[0], (3, 3, in_channels, feat_channels), jnp.float32)
    bc = 0.1 * jax.random.normal(ks[1], (1, feat_channels), jnp.float32)
    w1 = 0.1 * jax.random.normal(ks[2], (feat_channels, hidden), jnp.float32)
    b1 = 0.1 * jax.random.normal(ks[3], (1, hidden), jnp.float32)
    w2 = 0.1 * jax.random.normal(ks[4], (hidden, num_classes), jnp.float32)
    b2 = 0.1 * jax.random.normal(ks[5], (1, num_classes), jnp.float32)
    return (wc, bc, w1, b1, w2, b2)


def _reference_forward(x_nchw, params):
    """Pure-JAX f32 reference for correctness checking."""
    wc, bc, w1, b1, w2, b2 = params
    x = jnp.transpose(x_nchw, (0, 2, 3, 1))  # NHWC
    y = jax.lax.conv_general_dilated(
        x, wc, window_strides=(1, 1), padding="SAME",
        dimension_numbers=("NHWC", "HWIO", "NHWC"))
    y = _leaky_relu(y + bc.reshape(1, 1, 1, -1))
    pooled = jnp.mean(y, axis=(1, 2))                       # (N, Cf)
    feats = _leaky_relu(pooled @ w1 + b1)                   # (N, 128)
    out = feats @ w2 + b2                                   # (N, NC)
    return feats, out


if __name__ == "__main__":
    key = jax.random.PRNGKey(0)
    k_x, k_p = jax.random.split(key)

    N, Cin, H, W = 2, 4, 16, 16
    num_classes = 10

    x = jax.random.normal(k_x, (N, Cin, H, W), jnp.float32)
    params = init_params(k_p, Cin, num_classes)

    feats, out = gateconv_forward(x, params)
    feats, out = jax.block_until_ready((feats, out))

    feats_ref, out_ref = _reference_forward(x, params)
    assert feats.shape == (N, 128) and out.shape == (N, num_classes)
    # Tolerance accounts for bf16 matmul operands (f32 accumulation) in the kernel.
    assert jnp.allclose(feats, feats_ref, atol=2e-2, rtol=2e-2)
    assert jnp.allclose(out, out_ref, atol=2e-2, rtol=2e-2)

    print("KERNEL_OK")
</pallas_src>

<mosaic_0001>
module attributes {stable_mosaic.version = 11 : i64} {
  func.func @_gateconv_kernel(%arg0: i32, %arg1: memref<2x256x36xbf16, #tpu.memory_space<vmem>>, %arg2: memref<36x128xbf16, #tpu.memory_space<vmem>>, %arg3: memref<1x128xf32, #tpu.memory_space<vmem>>, %arg4: memref<128x128xbf16, #tpu.memory_space<vmem>>, %arg5: memref<1x128xf32, #tpu.memory_space<vmem>>, %arg6: memref<128x128xbf16, #tpu.memory_space<vmem>>, %arg7: memref<1x128xf32, #tpu.memory_space<vmem>>, %arg8: memref<2x128xf32, #tpu.memory_space<vmem>>, %arg9: memref<2x128xf32, #tpu.memory_space<vmem>>) attributes {dimension_semantics = [#tpu.dimension_semantics<parallel>], iteration_bounds = array<i64: 1>, scalar_prefetch = 0 : i64, scratch_operands = 0 : i64, tpu.core_type = #tpu.core_type<tc>, window_params = [{transform_indices = @transform_0, window_bounds = array<i64: 2, 256, 36>}, {pipeline_mode = #tpu.pipeline_mode<synchronous>, transform_indices = @transform_1, window_bounds = array<i64: 36, 128>}, {pipeline_mode = #tpu.pipeline_mode<synchronous>, transform_indices = @transform_2, window_bounds = array<i64: 1, 128>}, {pipeline_mode = #tpu.pipeline_mode<synchronous>, transform_indices = @transform_3, window_bounds = array<i64: 128, 128>}, {pipeline_mode = #tpu.pipeline_mode<synchronous>, transform_indices = @transform_4, window_bounds = array<i64: 1, 128>}, {pipeline_mode = #tpu.pipeline_mode<synchronous>, transform_indices = @transform_5, window_bounds = array<i64: 128, 128>}, {pipeline_mode = #tpu.pipeline_mode<synchronous>, transform_indices = @transform_6, window_bounds = array<i64: 1, 128>}, {transform_indices = @transform_7, window_bounds = array<i64: 2, 128>}, {transform_indices = @transform_8, window_bounds = array<i64: 2, 128>}]} {
    %c0 = arith.constant 0 : index
    %c0_0 = arith.constant 0 : index
    %0 = vector.load %arg2[%c0, %c0_0] : memref<36x128xbf16, #tpu.memory_space<vmem>>, vector<36x128xbf16>
    %c0_1 = arith.constant 0 : index
    %c0_2 = arith.constant 0 : index
    %1 = vector.load %arg3[%c0_1, %c0_2] : memref<1x128xf32, #tpu.memory_space<vmem>>, vector<1x128xf32>
    %cst = arith.constant 0.000000e+00 : f32
    %2 = vector.broadcast %cst : f32 to vector<2x128xf32>
    %c0_i32 = arith.constant 0 : i32
    %c128_i32 = arith.constant 128 : i32
    %3 = arith.muli %c0_i32, %c128_i32 : i32
    %4 = tpu.assume_multiple %3, 128 : i32
    %c0_3 = arith.constant 0 : index
    %5 = arith.index_cast %4 : i32 to index
    %c0_4 = arith.constant 0 : index
    %6 = vector.load %arg1[%c0_3, %5, %c0_4] : memref<2x256x36xbf16, #tpu.memory_space<vmem>>, vector<2x128x36xbf16>
    %7 = vector.shape_cast %6 : vector<2x128x36xbf16> to vector<256x36xbf16>
    %cst_5 = arith.constant dense<0.000000e+00> : vector<256x128xf32>
    %8 = tpu.matmul %7, %0, %cst_5 {dimension_numbers = #tpu.dot_dimension_numbers<[1], [0], [0], [1], [0, 0, 1, 1], [], []>} : vector<256x36xbf16>, vector<36x128xbf16>, vector<256x128xf32> -> vector<256x128xf32>
    %9 = vector.broadcast %1 : vector<1x128xf32> to vector<256x128xf32>
    %10 = arith.addf %8, %9 : vector<256x128xf32>
    %cst_6 = arith.constant 0.000000e+00 : f32
    %11 = vector.broadcast %cst_6 : f32 to vector<256x128xf32>
    %12 = arith.cmpf oge, %10, %11 : vector<256x128xf32>
    %cst_7 = arith.constant 0.00999999977 : f32
    %13 = vector.broadcast %cst_7 : f32 to vector<256x128xf32>
    %14 = arith.mulf %13, %10 : vector<256x128xf32>
    %15 = arith.select %12, %10, %14 : vector<256x128xi1>, vector<256x128xf32>
    %16 = vector.shape_cast %15 : vector<256x128xf32> to vector<2x128x128xf32>
    %cst_8 = arith.constant dense<0.000000e+00> : vector<2x128xf32>
    %17 = vector.multi_reduction <add>, %16, %cst_8 [1] : vector<2x128x128xf32> to vector<2x128xf32>
    %18 = arith.addf %2, %17 : vector<2x128xf32>
    %c1_i32 = arith.constant 1 : i32
    %c128_i32_9 = arith.constant 128 : i32
    %19 = arith.muli %c1_i32, %c128_i32_9 : i32
    %20 = tpu.assume_multiple %19, 128 : i32
    %c0_10 = arith.constant 0 : index
    %21 = arith.index_cast %20 : i32 to index
    %c0_11 = arith.constant 0 : index
    %22 = vector.load %arg1[%c0_10, %21, %c0_11] : memref<2x256x36xbf16, #tpu.memory_space<vmem>>, vector<2x128x36xbf16>
    %23 = vector.shape_cast %22 : vector<2x128x36xbf16> to vector<256x36xbf16>
    %cst_12 = arith.constant dense<0.000000e+00> : vector<256x128xf32>
    %24 = tpu.matmul %23, %0, %cst_12 {dimension_numbers = #tpu.dot_dimension_numbers<[1], [0], [0], [1], [0, 0, 1, 1], [], []>} : vector<256x36xbf16>, vector<36x128xbf16>, vector<256x128xf32> -> vector<256x128xf32>
    %25 = vector.broadcast %1 : vector<1x128xf32> to vector<256x128xf32>
    %26 = arith.addf %24, %25 : vector<256x128xf32>
    %cst_13 = arith.constant 0.000000e+00 : f32
    %27 = vector.broadcast %cst_13 : f32 to vector<256x128xf32>
    %28 = arith.cmpf oge, %26, %27 : vector<256x128xf32>
    %cst_14 = arith.constant 0.00999999977 : f32
    %29 = vector.broadcast %cst_14 : f32 to vector<256x128xf32>
    %30 = arith.mulf %29, %26 : vector<256x128xf32>
    %31 = arith.select %28, %26, %30 : vector<256x128xi1>, vector<256x128xf32>
    %32 = vector.shape_cast %31 : vector<256x128xf32> to vector<2x128x128xf32>
    %cst_15 = arith.constant dense<0.000000e+00> : vector<2x128xf32>
    %33 = vector.multi_reduction <add>, %32, %cst_15 [1] : vector<2x128x128xf32> to vector<2x128xf32>
    %34 = arith.addf %18, %33 : vector<2x128xf32>
    %c2_i32 = arith.constant 2 : i32
    %cst_16 = arith.constant 3.906250e-03 : f32
    %35 = vector.broadcast %cst_16 : f32 to vector<2x128xf32>
    %36 = arith.mulf %34, %35 : vector<2x128xf32>
    %37 = arith.truncf %36 : vector<2x128xf32> to vector<2x128xbf16>
    %c0_17 = arith.constant 0 : index
    %c0_18 = arith.constant 0 : index
    %38 = vector.load %arg4[%c0_17, %c0_18] : memref<128x128xbf16, #tpu.memory_space<vmem>>, vector<128x128xbf16>
    %cst_19 = arith.constant dense<0.000000e+00> : vector<2x128xf32>
    %39 = tpu.matmul %37, %38, %cst_19 {dimension_numbers = #tpu.dot_dimension_numbers<[1], [0], [0], [1], [0, 0, 1, 1], [], []>} : vector<2x128xbf16>, vector<128x128xbf16>, vector<2x128xf32> -> vector<2x128xf32>
    %c0_20 = arith.constant 0 : index
    %c0_21 = arith.constant 0 : index
    %40 = vector.load %arg5[%c0_20, %c0_21] : memref<1x128xf32, #tpu.memory_space<vmem>>, vector<1x128xf32>
    %41 = vector.broadcast %40 : vector<1x128xf32> to vector<2x128xf32>
    %42 = arith.addf %39, %41 : vector<2x128xf32>
    %cst_22 = arith.constant 0.000000e+00 : f32
    %43 = vector.broadcast %cst_22 : f32 to vector<2x128xf32>
    %44 = arith.cmpf oge, %42, %43 : vector<2x128xf32>
    %cst_23 = arith.constant 0.00999999977 : f32
    %45 = vector.broadcast %cst_23 : f32 to vector<2x128xf32>
    %46 = arith.mulf %45, %42 : vector<2x128xf32>
    %47 = arith.select %44, %42, %46 : vector<2x128xi1>, vector<2x128xf32>
    %c0_24 = arith.constant 0 : index
    %c0_25 = arith.constant 0 : index
    %48 = vector.load %arg8[%c0_24, %c0_25] : memref<2x128xf32, #tpu.memory_space<vmem>>, vector<2x128xf32>
    tpu.vector_store %arg8[%c0_24, %c0_25], %47 {strides = array<i32>} : memref<2x128xf32, #tpu.memory_space<vmem>>, vector<2x128xf32>,
    %49 = arith.truncf %47 : vector<2x128xf32> to vector<2x128xbf16>
    %c0_26 = arith.constant 0 : index
    %c0_27 = arith.constant 0 : index
    %50 = vector.load %arg6[%c0_26, %c0_27] : memref<128x128xbf16, #tpu.memory_space<vmem>>, vector<128x128xbf16>
    %cst_28 = arith.constant dense<0.000000e+00> : vector<2x128xf32>
    %51 = tpu.matmul %49, %50, %cst_28 {dimension_numbers = #tpu.dot_dimension_numbers<[1], [0], [0], [1], [0, 0, 1, 1], [], []>} : vector<2x128xbf16>, vector<128x128xbf16>, vector<2x128xf32> -> vector<2x128xf32>
    %c0_29 = arith.constant 0 : index
    %c0_30 = arith.constant 0 : index
    %52 = vector.load %arg7[%c0_29, %c0_30] : memref<1x128xf32, #tpu.memory_space<vmem>>, vector<1x128xf32>
    %53 = vector.broadcast %52 : vector<1x128xf32> to vector<2x128xf32>
    %54 = arith.addf %51, %53 : vector<2x128xf32>
    %c0_31 = arith.constant 0 : index
    %c0_32 = arith.constant 0 : index
    %55 = vector.load %arg9[%c0_31, %c0_32] : memref<2x128xf32, #tpu.memory_space<vmem>>, vector<2x128xf32>
    tpu.vector_store %arg9[%c0_31, %c0_32], %54 {strides = array<i32>} : memref<2x128xf32, #tpu.memory_space<vmem>>, vector<2x128xf32>,
    return
  }
  func.func @transform_0(%arg0: i32) -> (i32, i32, i32) {
    %c0_i32 = arith.constant 0 : i32
    %c0_i32_0 = arith.constant 0 : i32
    %c0_i32_1 = arith.constant 0 : i32
    return %arg0, %c0_i32, %c0_i32_0 : i32, i32, i32
  }
  func.func @transform_1(%arg0: i32) -> (i32, i32) {
    %c0_i32 = arith.constant 0 : i32
    %c0_i32_0 = arith.constant 0 : i32
    %c0_i32_1 = arith.constant 0 : i32
    return %c0_i32, %c0_i32_0 : i32, i32
  }
  func.func @transform_2(%arg0: i32) -> (i32, i32) {
    %c0_i32 = arith.constant 0 : i32
    %c0_i32_0 = arith.constant 0 : i32
    %c0_i32_1 = arith.constant 0 : i32
    return %c0_i32, %c0_i32_0 : i32, i32
  }
  func.func @transform_3(%arg0: i32) -> (i32, i32) {
    %c0_i32 = arith.constant 0 : i32
    %c0_i32_0 = arith.constant 0 : i32
    %c0_i32_1 = arith.constant 0 : i32
    return %c0_i32, %c0_i32_0 : i32, i32
  }
  func.func @transform_4(%arg0: i32) -> (i32, i32) {
    %c0_i32 = arith.constant 0 : i32
    %c0_i32_0 = arith.constant 0 : i32
    %c0_i32_1 = arith.constant 0 : i32
    return %c0_i32, %c0_i32_0 : i32, i32
  }
  func.func @transform_5(%arg0: i32) -> (i32, i32) {
    %c0_i32 = arith.constant 0 : i32
    %c0_i32_0 = arith.constant 0 : i32
    %c0_i32_1 = arith.constant 0 : i32
    return %c0_i32, %c0_i32_0 : i32, i32
  }
  func.func @transform_6(%arg0: i32) -> (i32, i32) {
    %c0_i32 = arith.constant 0 : i32
    %c0_i32_0 = arith.constant 0 : i32
    %c0_i32_1 = arith.constant 0 : i32
    return %c0_i32, %c0_i32_0 : i32, i32
  }
  func.func @transform_7(%arg0: i32) -> (i32, i32) {
    %c0_i32 = arith.constant 0 : i32
    %c0_i32_0 = arith.constant 0 : i32
    return %arg0, %c0_i32 : i32, i32
  }
  func.func @transform_8(%arg0: i32) -> (i32, i32) {
    %c0_i32 = arith.constant 0 : i32
    %c0_i32_0 = arith.constant 0 : i32
    return %arg0, %c0_i32 : i32, i32
  }
}

</mosaic_0001>

<llo_original>
// kernel: gateconv_forward.1
$region0: #{gateconv_forward.1}
  #allocation0 [shape = 'u32[]', space=smem, size = 0x4, offset = 0x4, fixed_abs, tag = 'smem constant byte address 0x4 - core index']
  #allocation1 [shape = 'u32[144,128]{1,0:T(1,128)}', space=vmem, size = 0x12000, scoped, tag = 'internal scratch']
  %s0 = inlined_call_operand.vmem [shape: bf16[2,256,36], index: 0, kind: input, shape index: {}]
  %s1 = inlined_call_operand.vmem [shape: bf16[36,128], index: 1, kind: input, shape index: {}]
  %s2 = inlined_call_operand.vmem [shape: f32[1,128], index: 2, kind: input, shape index: {}]
  %s3 = inlined_call_operand.vmem [shape: bf16[128,128], index: 3, kind: input, shape index: {}]
  %s4 = inlined_call_operand.vmem [shape: f32[1,128], index: 4, kind: input, shape index: {}]
  %s5 = inlined_call_operand.vmem [shape: bf16[128,128], index: 5, kind: input, shape index: {}]
  %s6 = inlined_call_operand.vmem [shape: f32[1,128], index: 6, kind: input, shape index: {}]
  %s7 = inlined_call_operand.hbm [shape: f32[2,128], index: 7, kind: output, shape index: {0}]
  %s8 = inlined_call_operand.hbm [shape: f32[2,128], index: 8, kind: output, shape index: {1}]
  %9 = xla_tuple %s7, %s8
  %s10 = sld [smem:[#allocation0]]
  $region46: #{gateconv_forward.1} parent=0
    _
  %s12 = ssub.s32 1, %s10
  %s13 = scalar_select 0, %s12, %s10
  $region1: #{gateconv_forward.1} parent=0
    #allocation2 [shape = 'u8[1024]{0}', space=vmem, size = 0x400, scoped, tag = 'output window, operand 0, single buffered']
    #allocation3 [shape = 's32[1]{0}', space=sflag, size = 0x4, scoped, tag = 'scoped memory for gateconv_forward.1']
    #allocation4 [shape = 'u8[1024]{0}', space=vmem, size = 0x400, scoped, tag = 'output window, operand 1, single buffered']
    #allocation5 [shape = 's32[1]{0}', space=sflag, size = 0x4, scoped, tag = 'scoped memory for gateconv_forward.1']
    %14 = vsyncpa [#allocation3], 0
    %15 = vsyncpa [#allocation5], 0
    // Predicated region
    $region2: #{gateconv_forward.1} parent=1 // pred_check
      _
    $region3: #{gateconv_forward.1} parent=1 // pred_check_branch
      %17 = sbr.rel (0) target = $region5
    $region4: #{gateconv_forward.1} parent=1 // pred_region
      _
    $region5: #{gateconv_forward.1} parent=1 // pred_fallthru
      _
    // Predicated region
    $region6: #{gateconv_forward.1} parent=1 // pred_check
      _
    $region7: #{gateconv_forward.1} parent=1 // pred_check_branch
      %19 = sbr.rel (0) target = $region9
    $region8: #{gateconv_forward.1} parent=1 // pred_region
      _
    $region9: #{gateconv_forward.1} parent=1 // pred_fallthru
      _
    // Predicated region
    $region10: #{gateconv_forward.1} parent=1 // pred_check
      _
    $region11: #{gateconv_forward.1} parent=1 // pred_check_branch
      %21 = sbr.rel (0) target = $region13
    $region12: #{gateconv_forward.1} parent=1 // pred_region
      _
    $region13: #{gateconv_forward.1} parent=1 // pred_fallthru
      _
    // Predicated region
    $region14: #{gateconv_forward.1} parent=1 // pred_check
      _
    $region15: #{gateconv_forward.1} parent=1 // pred_check_branch
      %23 = sbr.rel (0) target = $region17
    $region16: #{gateconv_forward.1} parent=1 // pred_region
      _
    $region17: #{gateconv_forward.1} parent=1 // pred_fallthru
      _
    // Predicated region
    $region18: #{gateconv_forward.1} parent=1 // pred_check
      _
    $region19: #{gateconv_forward.1} parent=1 // pred_check_branch
      %25 = sbr.rel (0) target = $region21
    $region20: #{gateconv_forward.1} parent=1 // pred_region
      _
    $region21: #{gateconv_forward.1} parent=1 // pred_fallthru
      _
    // Predicated region
    $region22: #{gateconv_forward.1} parent=1 // pred_check
      _
    $region23: #{gateconv_forward.1} parent=1 // pred_check_branch
      %27 = sbr.rel (0) target = $region25
    $region24: #{gateconv_forward.1} parent=1 // pred_region
      _
    $region25: #{gateconv_forward.1} parent=1 // pred_fallthru
      _
    // Predicated region
    $region26: #{gateconv_forward.1} parent=1 // pred_check
      _
    $region27: #{gateconv_forward.1} parent=1 // pred_check_branch
      %29 = sbr.rel (0) target = $region29
    $region28: #{gateconv_forward.1} parent=1 // pred_region
      _
    $region29: #{gateconv_forward.1} parent=1 // pred_fallthru
      _
    %v31 = vld [vmem:[%s1] sm:$0xf]
    %v32 = vld [vmem:[%s1 + $0x4] sm:$0xf]
    %v33 = vld [vmem:[%s1 + $0x8] sm:$0xf]
    %v34 = vld [vmem:[%s1 + $0xc] sm:$0xf]
    %v35 = vld [vmem:[%s1 + $0x10] sm:$0x3]
    %v36 = vld [vmem:[%s2] sm:$0x1]
    %v37 = vld [vmem:[%s0] sm:$0xf]
    %v38 = vld [vmem:[%s0 + $0x4] sm:$0xf]
    %v39 = vld [vmem:[%s0 + $0x8] sm:$0xf]
    %v40 = vld [vmem:[%s0 + $0xc] sm:$0xf]
    %v41 = vld [vmem:[%s0 + $0x10] sm:$0xf]
    %v42 = vld [vmem:[%s0 + $0x14] sm:$0xf]
    %v43 = vld [vmem:[%s0 + $0x18] sm:$0xf]
    %v44 = vld [vmem:[%s0 + $0x1c] sm:$0xf]
    %v45 = vld [vmem:[%s0 + $0x20] sm:$0xf]
    %v46 = vld [vmem:[%s0 + $0x24] sm:$0xf]
    %v47 = vld [vmem:[%s0 + $0x28] sm:$0xf]
    %v48 = vld [vmem:[%s0 + $0x2c] sm:$0xf]
    %v49 = vld [vmem:[%s0 + $0x30] sm:$0xf]
    %v50 = vld [vmem:[%s0 + $0x34] sm:$0xf]
    %v51 = vld [vmem:[%s0 + $0x38] sm:$0xf]
    %v52 = vld [vmem:[%s0 + $0x3c] sm:$0xf]
    %v53 = vld [vmem:[%s0 + $0x80] sm:$0xf]
    %v54 = vld [vmem:[%s0 + $0x84] sm:$0xf]
    %v55 = vld [vmem:[%s0 + $0x88] sm:$0xf]
    %v56 = vld [vmem:[%s0 + $0x8c] sm:$0xf]
    %v57 = vld [vmem:[%s0 + $0x90] sm:$0xf]
    %v58 = vld [vmem:[%s0 + $0x94] sm:$0xf]
    %v59 = vld [vmem:[%s0 + $0x98] sm:$0xf]
    %v60 = vld [vmem:[%s0 + $0x9c] sm:$0xf]
    %v61 = vld [vmem:[%s0 + $0xa0] sm:$0xf]
    %v62 = vld [vmem:[%s0 + $0xa4] sm:$0xf]
    %v63 = vld [vmem:[%s0 + $0xa8] sm:$0xf]
    %v64 = vld [vmem:[%s0 + $0xac] sm:$0xf]
    %v65 = vld [vmem:[%s0 + $0xb0] sm:$0xf]
    %v66 = vld [vmem:[%s0 + $0xb4] sm:$0xf]
    %v67 = vld [vmem:[%s0 + $0xb8] sm:$0xf]
    %v68 = vld [vmem:[%s0 + $0xbc] sm:$0xf]
    %v70 = vlaneseq
    %v71 = vshrl.u32 %v70, 7
    %v72 = vsub.s32 0, %v71
    %v73 = vrot.slane %v36, %v72
    %v107 = vunpack.c.l.b16 %v37
    %v108 = vunpack.c.l.b16 %v38
    %v109 = vunpack.c.l.b16 %v39
    %v110 = vunpack.c.l.b16 %v40
    %v111 = vunpack.c.l.b16 %v41
    %v112 = vunpack.c.l.b16 %v42
    %v113 = vunpack.c.l.b16 %v43
    %v114 = vunpack.c.l.b16 %v44
    %v115 = vunpack.c.l.b16 %v45
    %v116 = vunpack.c.l.b16 %v46
    %v117 = vunpack.c.l.b16 %v47
    %v118 = vunpack.c.l.b16 %v48
    %v119 = vunpack.c.l.b16 %v49
    %v120 = vunpack.c.l.b16 %v50
    %v121 = vunpack.c.l.b16 %v51
    %v122 = vunpack.c.l.b16 %v52
    %v123 = vunpack.c.l.b16 %v53
    %v124 = vunpack.c.l.b16 %v54
    %v125 = vunpack.c.l.b16 %v55
    %v126 = vunpack.c.l.b16 %v56
    %v127 = vunpack.c.l.b16 %v57
    %v128 = vunpack.c.l.b16 %v58
    %v129 = vunpack.c.l.b16 %v59
    %v130 = vunpack.c.l.b16 %v60
    %v131 = vunpack.c.l.b16 %v61
    %v132 = vunpack.c.l.b16 %v62
    %v133 = vunpack.c.l.b16 %v63
    %v134 = vunpack.c.l.b16 %v64
    %v135 = vunpack.c.l.b16 %v65
    %v136 = vunpack.c.l.b16 %v66
    %v137 = vunpack.c.l.b16 %v67
    %v138 = vunpack.c.l.b16 %v68
    %v139 = vpack.c.b16 %v108, %v107
    %v140 = vpack.c.b16 %v110, %v109
    %v141 = vpack.c.b16 %v112, %v111
    %v142 = vpack.c.b16 %v114, %v113
    %v143 = vpack.c.b16 %v116, %v115
    %v144 = vpack.c.b16 %v118, %v117
    %v145 = vpack.c.b16 %v120, %v119
    %v146 = vpack.c.b16 %v122, %v121
    %v147 = vpack.c.b16 %v124, %v123
    %v148 = vpack.c.b16 %v126, %v125
    %v149 = vpack.c.b16 %v128, %v127
    %v150 = vpack.c.b16 %v130, %v129
    %v151 = vpack.c.b16 %v132, %v131
    %v152 = vpack.c.b16 %v134, %v133
    %v153 = vpack.c.b16 %v136, %v135
    %v154 = vpack.c.b16 %v138, %v137
    %v160 = vunpack.c.l.b16 %v31
    %v161 = vunpack.c.l.b16 %v32
    %v162 = vunpack.c.l.b16 %v33
    %v163 = vunpack.c.l.b16 %v34
    %v164 = vunpack.c.l.b16 %v35
    %v165 = vpack.c.b16 %v161, %v160
    %v166 = vpack.c.b16 %v163, %v162
    %v167 = vpack.c.b16 %v164, %v164
    %vm170 = vcmask 293888
    %v172 = vsel %vm170, %v139, 0
    %v175 = vsel %vm170, %v140, 0
    %v178 = vsel %vm170, %v141, 0
    %v181 = vsel %vm170, %v142, 0
    %v184 = vsel %vm170, %v143, 0
    %v187 = vsel %vm170, %v144, 0
    %v190 = vsel %vm170, %v145, 0
    %v193 = vsel %vm170, %v146, 0
    %v196 = vsel %vm170, %v147, 0
    %v199 = vsel %vm170, %v148, 0
    %v202 = vsel %vm170, %v149, 0
    %v205 = vsel %vm170, %v150, 0
    %v208 = vsel %vm170, %v151, 0
    %v211 = vsel %vm170, %v152, 0
    %v214 = vsel %vm170, %v153, 0
    %v217 = vsel %vm170, %v154, 0
    %vm219 = vcmask 1041408
    %v221 = vsel %vm219, %v167, 0
    %223 = vmatprep.subr.bf16.mxu0 0
    %224 = vmatpush1.bf16.msra.mxu0 %v165
    %225 = vmatprep.subr.bf16.mxu0 0
    %226 = vmatpush1.bf16.msra.mxu0 %v166
    %227 = vmatprep.subr.bf16.mxu0 0
    %228 = vmatpush1.bf16.msra.mxu0 %v221
    %229 = vmatprep.subr.bf16.mxu0 0
    %230 = vmatpush1.bf16.msra.mxu0 0
    %231 = vmatprep.subr.bf16.mxu0 0
    %232 = vmatpush1.bf16.msra.mxu0 0
    %233 = vmatprep.subr.bf16.mxu0 0
    %234 = vmatpush1.bf16.msra.mxu0 0
    %235 = vmatprep.subr.bf16.mxu0 0
    %236 = vmatpush1.bf16.msra.mxu0 0
    %237 = vmatprep.subr.bf16.mxu0 0
    %238 = vmatpush1.bf16.msra.mxu0 0
    %239 = vmatprep.subr.bf16.mxu0 0
    %240 = vmatpush1.bf16.msra.mxu0 0
    %241 = vmatprep.subr.bf16.mxu0 0
    %242 = vmatpush1.bf16.msra.mxu0 0
    %243 = vmatprep.subr.bf16.mxu0 0
    %244 = vmatpush1.bf16.msra.mxu0 0
    %245 = vmatprep.subr.bf16.mxu0 0
    %246 = vmatpush1.bf16.msra.mxu0 0
    %247 = vmatprep.subr.bf16.mxu0 0
    %248 = vmatpush1.bf16.msra.mxu0 0
    %249 = vmatprep.subr.bf16.mxu0 0
    %250 = vmatpush1.bf16.msra.mxu0 0
    %251 = vmatprep.subr.bf16.mxu0 0
    %252 = vmatpush1.bf16.msra.mxu0 0
    %253 = vmatprep.subr.bf16.mxu0 0
    %254 = vmatpush1.bf16.msra.mxu0 0
    %255 = vmatprep.mubr.bf16.mxu0 0
    %256 = vmatmul.mubr.bf16.gmra.mrb[0].mxu0 %v172
    %v257 = vpop.f32.mrb[0].mxu0
    %v258 = vadd.f32 %v73, %v257
    %v259 = vpop.f32.mrb[0].mxu0
    %v260 = vpop.f32.mrb[0].mxu0
    %v261 = vadd.f32 %v73, %v260
    %v262 = vpop.f32.mrb[0].mxu0
    %263 = vmatprep.mubr.bf16.mxu0 0
    %264 = vmatmul.mubr.bf16.gmra.mrb[0].mxu0 %v175
    %v265 = vpop.f32.mrb[0].mxu0
    %v266 = vadd.f32 %v73, %v265
    %v267 = vpop.f32.mrb[0].mxu0
    %v268 = vpop.f32.mrb[0].mxu0
    %v269 = vadd.f32 %v73, %v268
    %v270 = vpop.f32.mrb[0].mxu0
    %271 = vmatprep.mubr.bf16.mxu0 0
    %272 = vmatmul.mubr.bf16.gmra.mrb[0].mxu0 %v178
    %v273 = vpop.f32.mrb[0].mxu0
    %v274 = vadd.f32 %v73, %v273
    %v275 = vpop.f32.mrb[0].mxu0
    %v276 = vpop.f32.mrb[0].mxu0
    %v277 = vadd.f32 %v73, %v276
    %v278 = vpop.f32.mrb[0].mxu0
    %279 = vmatprep.mubr.bf16.mxu0 0
    %280 = vmatmul.mubr.bf16.gmra.mrb[0].mxu0 %v181
    %v281 = vpop.f32.mrb[0].mxu0
    %v282 = vadd.f32 %v73, %v281
    %v283 = vpop.f32.mrb[0].mxu0
    %v284 = vpop.f32.mrb[0].mxu0
    %v285 = vadd.f32 %v73, %v284
    %v286 = vpop.f32.mrb[0].mxu0
    %287 = vmatprep.mubr.bf16.mxu0 0
    %288 = vmatmul.mubr.bf16.gmra.mrb[0].mxu0 %v184
    %v289 = vpop.f32.mrb[0].mxu0
    %v290 = vadd.f32 %v73, %v289
    %v291 = vpop.f32.mrb[0].mxu0
    %v292 = vpop.f32.mrb[0].mxu0
    %v293 = vadd.f32 %v73, %v292
    %v294 = vpop.f32.mrb[0].mxu0
    %295 = vmatprep.mubr.bf16.mxu0 0
    %296 = vmatmul.mubr.bf16.gmra.mrb[0].mxu0 %v187
    %v297 = vpop.f32.mrb[0].mxu0
    %v298 = vadd.f32 %v73, %v297
    %v299 = vpop.f32.mrb[0].mxu0
    %v300 = vpop.f32.mrb[0].mxu0
    %v301 = vadd.f32 %v73, %v300
    %v302 = vpop.f32.mrb[0].mxu0
    %303 = vmatprep.mubr.bf16.mxu0 0
    %304 = vmatmul.mubr.bf16.gmra.mrb[0].mxu0 %v190
    %v305 = vpop.f32.mrb[0].mxu0
    %v306 = vadd.f32 %v73, %v305
    %v307 = vpop.f32.mrb[0].mxu0
    %v308 = vpop.f32.mrb[0].mxu0
    %v309 = vadd.f32 %v73, %v308
    %v310 = vpop.f32.mrb[0].mxu0
    %311 = vmatprep.mubr.bf16.mxu0 0
    %312 = vmatmul.mubr.bf16.gmra.mrb[0].mxu0 %v193
    %v313 = vpop.f32.mrb[0].mxu0
    %v314 = vadd.f32 %v73, %v313
    %v315 = vpop.f32.mrb[0].mxu0
    %v316 = vpop.f32.mrb[0].mxu0
    %v317 = vadd.f32 %v73, %v316
    %v318 = vpop.f32.mrb[0].mxu0
    %319 = vmatprep.mubr.bf16.mxu0 0
    %320 = vmatmul.mubr.bf16.gmra.mrb[0].mxu0 %v196
    %v321 = vpop.f32.mrb[0].mxu0
    %v322 = vadd.f32 %v73, %v321
    %v323 = vpop.f32.mrb[0].mxu0
    %v324 = vpop.f32.mrb[0].mxu0
    %v325 = vadd.f32 %v73, %v324
    %v326 = vpop.f32.mrb[0].mxu0
    %327 = vmatprep.mubr.bf16.mxu0 0
    %328 = vmatmul.mubr.bf16.gmra.mrb[0].mxu0 %v199
    %v329 = vpop.f32.mrb[0].mxu0
    %v330 = vadd.f32 %v73, %v329
    %v331 = vpop.f32.mrb[0].mxu0
    %v332 = vpop.f32.mrb[0].mxu0
    %v333 = vadd.f32 %v73, %v332
    %v334 = vpop.f32.mrb[0].mxu0
    %335 = vmatprep.mubr.bf16.mxu0 0
    %336 = vmatmul.mubr.bf16.gmra.mrb[0].mxu0 %v202
    %v337 = vpop.f32.mrb[0].mxu0
    %v338 = vadd.f32 %v73, %v337
    %v339 = vpop.f32.mrb[0].mxu0
    %v340 = vpop.f32.mrb[0].mxu0
    %v341 = vadd.f32 %v73, %v340
    %v342 = vpop.f32.mrb[0].mxu0
    %343 = vmatprep.mubr.bf16.mxu0 0
    %344 = vmatmul.mubr.bf16.gmra.mrb[0].mxu0 %v205
    %v345 = vpop.f32.mrb[0].mxu0
    %v346 = vadd.f32 %v73, %v345
    %v347 = vpop.f32.mrb[0].mxu0
    %v348 = vpop.f32.mrb[0].mxu0
    %v349 = vadd.f32 %v73, %v348
    %v350 = vpop.f32.mrb[0].mxu0
    %351 = vmatprep.mubr.bf16.mxu0 0
    %352 = vmatmul.mubr.bf16.gmra.mrb[0].mxu0 %v208
    %v353 = vpop.f32.mrb[0].mxu0
    %v354 = vadd.f32 %v73, %v353
    %v355 = vpop.f32.mrb[0].mxu0
    %v356 = vpop.f32.mrb[0].mxu0
    %v357 = vadd.f32 %v73, %v356
    %v358 = vpop.f32.mrb[0].mxu0
    %359 = vmatprep.mubr.bf16.mxu0 0
    %360 = vmatmul.mubr.bf16.gmra.mrb[0].mxu0 %v211
    %v361 = vpop.f32.mrb[0].mxu0
    %v362 = vadd.f32 %v73, %v361
    %v363 = vpop.f32.mrb[0].mxu0
    %v364 = vpop.f32.mrb[0].mxu0
    %v365 = vadd.f32 %v73, %v364
    %v366 = vpop.f32.mrb[0].mxu0
    %367 = vmatprep.mubr.bf16.mxu0 0
    %368 = vmatmul.mubr.bf16.gmra.mrb[0].mxu0 %v214
    %v369 = vpop.f32.mrb[0].mxu0
    %v370 = vadd.f32 %v73, %v369
    %v371 = vpop.f32.mrb[0].mxu0
    %v372 = vpop.f32.mrb[0].mxu0
    %v373 = vadd.f32 %v73, %v372
    %v374 = vpop.f32.mrb[0].mxu0
    %375 = vmatprep.mubr.bf16.mxu0 0
    %376 = vmatmul.mubr.bf16.gmra.mrb[0].mxu0 %v217
    %v377 = vpop.f32.mrb[0].mxu0
    %v378 = vadd.f32 %v73, %v377
    %v379 = vpop.f32.mrb[0].mxu0
    %v380 = vpop.f32.mrb[0].mxu0
    %v381 = vadd.f32 %v73, %v380
    %v382 = vpop.f32.mrb[0].mxu0
    %383 = vdwg.mxu0
    %vm384 = vcmp.ge.f32.partialorder %v258, 0.0
    %vm385 = vcmp.ge.f32.partialorder %v261, 0.0
    %vm386 = vcmp.ge.f32.partialorder %v266, 0.0
    %vm387 = vcmp.ge.f32.partialorder %v269, 0.0
    %vm388 = vcmp.ge.f32.partialorder %v274, 0.0
    %vm389 = vcmp.ge.f32.partialorder %v277, 0.0
    %vm390 = vcmp.ge.f32.partialorder %v282, 0.0
    %vm391 = vcmp.ge.f32.partialorder %v285, 0.0
    %vm392 = vcmp.ge.f32.partialorder %v290, 0.0
    %vm393 = vcmp.ge.f32.partialorder %v293, 0.0
    %vm394 = vcmp.ge.f32.partialorder %v298, 0.0
    %vm395 = vcmp.ge.f32.partialorder %v301, 0.0
    %vm396 = vcmp.ge.f32.partialorder %v306, 0.0
    %vm397 = vcmp.ge.f32.partialorder %v309, 0.0
    %vm398 = vcmp.ge.f32.partialorder %v314, 0.0
    %vm399 = vcmp.ge.f32.partialorder %v317, 0.0
    %vm400 = vcmp.ge.f32.partialorder %v322, 0.0
    %vm401 = vcmp.ge.f32.partialorder %v325, 0.0
    %vm402 = vcmp.ge.f32.partialorder %v330, 0.0
    %vm403 = vcmp.ge.f32.partialorder %v333, 0.0
    %vm404 = vcmp.ge.f32.partialorder %v338, 0.0
    %vm405 = vcmp.ge.f32.partialorder %v341, 0.0
    %vm406 = vcmp.ge.f32.partialorder %v346, 0.0
    %vm407 = vcmp.ge.f32.partialorder %v349, 0.0
    %vm408 = vcmp.ge.f32.partialorder %v354, 0.0
    %vm409 = vcmp.ge.f32.partialorder %v357, 0.0
    %vm410 = vcmp.ge.f32.partialorder %v362, 0.0
    %vm411 = vcmp.ge.f32.partialorder %v365, 0.0
    %vm412 = vcmp.ge.f32.partialorder %v370, 0.0
    %vm413 = vcmp.ge.f32.partialorder %v373, 0.0
    %vm414 = vcmp.ge.f32.partialorder %v378, 0.0
    %vm415 = vcmp.ge.f32.partialorder %v381, 0.0
    %v416 = vmul.f32 %v258, 0.01
    %v417 = vmul.f32 %v261, 0.01
    %v418 = vmul.f32 %v266, 0.01
    %v419 = vmul.f32 %v269, 0.01
    %v420 = vmul.f32 %v274, 0.01
    %v421 = vmul.f32 %v277, 0.01
    %v422 = vmul.f32 %v282, 0.01
    %v423 = vmul.f32 %v285, 0.01
    %v424 = vmul.f32 %v290, 0.01
    %v425 = vmul.f32 %v293, 0.01
    %v426 = vmul.f32 %v298, 0.01
    %v427 = vmul.f32 %v301, 0.01
    %v428 = vmul.f32 %v306, 0.01
    %v429 = vmul.f32 %v309, 0.01
    %v430 = vmul.f32 %v314, 0.01
    %v431 = vmul.f32 %v317, 0.01
    %v432 = vmul.f32 %v322, 0.01
    %v433 = vmul.f32 %v325, 0.01
    %v434 = vmul.f32 %v330, 0.01
    %v435 = vmul.f32 %v333, 0.01
    %v436 = vmul.f32 %v338, 0.01
    %v437 = vmul.f32 %v341, 0.01
    %v438 = vmul.f32 %v346, 0.01
    %v439 = vmul.f32 %v349, 0.01
    %v440 = vmul.f32 %v354, 0.01
    %v441 = vmul.f32 %v357, 0.01
    %v442 = vmul.f32 %v362, 0.01
    %v443 = vmul.f32 %v365, 0.01
    %v444 = vmul.f32 %v370, 0.01
    %v445 = vmul.f32 %v373, 0.01
    %v446 = vmul.f32 %v378, 0.01
    %v447 = vmul.f32 %v381, 0.01
    %v448 = vsel %vm384, %v258, %v416
    %v449 = vsel %vm385, %v261, %v417
    %v450 = vsel %vm386, %v266, %v418
    %v451 = vsel %vm387, %v269, %v419
    %v452 = vsel %vm388, %v274, %v420
    %v453 = vsel %vm389, %v277, %v421
    %v454 = vsel %vm390, %v282, %v422
    %v455 = vsel %vm391, %v285, %v423
    %v456 = vsel %vm392, %v290, %v424
    %v457 = vsel %vm393, %v293, %v425
    %v458 = vsel %vm394, %v298, %v426
    %v459 = vsel %vm395, %v301, %v427
    %v460 = vsel %vm396, %v306, %v428
    %v461 = vsel %vm397, %v309, %v429
    %v462 = vsel %vm398, %v314, %v430
    %v463 = vsel %vm399, %v317, %v431
    %v464 = vsel %vm400, %v322, %v432
    %v465 = vsel %vm401, %v325, %v433
    %v466 = vsel %vm402, %v330, %v434
    %v467 = vsel %vm403, %v333, %v435
    %v468 = vsel %vm404, %v338, %v436
    %v469 = vsel %vm405, %v341, %v437
    %v470 = vsel %vm406, %v346, %v438
    %v471 = vsel %vm407, %v349, %v439
    %v472 = vsel %vm408, %v354, %v440
    %v473 = vsel %vm409, %v357, %v441
    %v474 = vsel %vm410, %v362, %v442
    %v475 = vsel %vm411, %v365, %v443
    %v476 = vsel %vm412, %v370, %v444
    %v477 = vsel %vm413, %v373, %v445
    %v478 = vsel %vm414, %v378, %v446
    %v479 = vsel %vm415, %v381, %v447
    %v480 = vadd.f32 %v448, %v449
    %v481 = vadd.f32 %v480, %v450
    %v482 = vadd.f32 %v481, %v451
    %v483 = vadd.f32 %v482, %v452
    %v484 = vadd.f32 %v483, %v453
    %v485 = vadd.f32 %v484, %v454
    %v486 = vadd.f32 %v485, %v455
    %v487 = vadd.f32 %v486, %v456
    %v488 = vadd.f32 %v487, %v457
    %v489 = vadd.f32 %v488, %v458
    %v490 = vadd.f32 %v489, %v459
    %v491 = vadd.f32 %v490, %v460
    %v492 = vadd.f32 %v491, %v461
    %v493 = vadd.f32 %v492, %v462
    %v494 = vadd.f32 %v493, %v463
    %v495 = vrot.slane %v494, 4
    %v496 = vadd.f32 %v494, %v495
    %v497 = vrot.slane %v496, 2
    %v498 = vadd.f32 %v496, %v497
    %v499 = vrot.slane %v498, 1
    %v500 = vadd.f32 %v498, %v499
    %v501 = vadd.f32 %v464, %v465
    %v502 = vadd.f32 %v501, %v466
    %v503 = vadd.f32 %v502, %v467
    %v504 = vadd.f32 %v503, %v468
    %v505 = vadd.f32 %v504, %v469
    %v506 = vadd.f32 %v505, %v470
    %v507 = vadd.f32 %v506, %v471
    %v508 = vadd.f32 %v507, %v472
    %v509 = vadd.f32 %v508, %v473
    %v510 = vadd.f32 %v509, %v474
    %v511 = vadd.f32 %v510, %v475
    %v512 = vadd.f32 %v511, %v476
    %v513 = vadd.f32 %v512, %v477
    %v514 = vadd.f32 %v513, %v478
    %v515 = vadd.f32 %v514, %v479
    %v516 = vrot.slane %v515, 4
    %v517 = vadd.f32 %v515, %v516
    %v518 = vrot.slane %v517, 2
    %v519 = vadd.f32 %v517, %v518
    %v520 = vrot.slane %v519, 1
    %v521 = vadd.f32 %v519, %v520
    %v522 = vadd.f32 %v500, 0.0
    %v523 = vadd.f32 %v521, 0.0
    %s524 = scalar_lea.vmem %s0, 64
    %v525 = vld [vmem:[%s524] sm:$0xf]
    %v526 = vld [vmem:[%s524 + $0x4] sm:$0xf]
    %v527 = vld [vmem:[%s524 + $0x8] sm:$0xf]
    %v528 = vld [vmem:[%s524 + $0xc] sm:$0xf]
    %v529 = vld [vmem:[%s524 + $0x10] sm:$0xf]
    %v530 = vld [vmem:[%s524 + $0x14] sm:$0xf]
    %v531 = vld [vmem:[%s524 + $0x18] sm:$0xf]
    %v532 = vld [vmem:[%s524 + $0x1c] sm:$0xf]
    %v533 = vld [vmem:[%s524 + $0x20] sm:$0xf]
    %v534 = vld [vmem:[%s524 + $0x24] sm:$0xf]
    %v535 = vld [vmem:[%s524 + $0x28] sm:$0xf]
    %v536 = vld [vmem:[%s524 + $0x2c] sm:$0xf]
    %v537 = vld [vmem:[%s524 + $0x30] sm:$0xf]
    %v538 = vld [vmem:[%s524 + $0x34] sm:$0xf]
    %v539 = vld [vmem:[%s524 + $0x38] sm:$0xf]
    %v540 = vld [vmem:[%s524 + $0x3c] sm:$0xf]
    %v541 = vld [vmem:[%s524 + $0x80] sm:$0xf]
    %v542 = vld [vmem:[%s524 + $0x84] sm:$0xf]
    %v543 = vld [vmem:[%s524 + $0x88] sm:$0xf]
    %v544 = vld [vmem:[%s524 + $0x8c] sm:$0xf]
    %v545 = vld [vmem:[%s524 + $0x90] sm:$0xf]
    %v546 = vld [vmem:[%s524 + $0x94] sm:$0xf]
    %v547 = vld [vmem:[%s524 + $0x98] sm:$0xf]
    %v548 = vld [vmem:[%s524 + $0x9c] sm:$0xf]
    %v549 = vld [vmem:[%s524 + $0xa0] sm:$0xf]
    %v550 = vld [vmem:[%s524 + $0xa4] sm:$0xf]
    %v551 = vld [vmem:[%s524 + $0xa8] sm:$0xf]
    %v552 = vld [vmem:[%s524 + $0xac] sm:$0xf]
    %v553 = vld [vmem:[%s524 + $0xb0] sm:$0xf]
    %v554 = vld [vmem:[%s524 + $0xb4] sm:$0xf]
    %v555 = vld [vmem:[%s524 + $0xb8] sm:$0xf]
    %v556 = vld [vmem:[%s524 + $0xbc] sm:$0xf]
    %v589 = vunpack.c.l.b16 %v525
    %v590 = vunpack.c.l.b16 %v526
    %v591 = vunpack.c.l.b16 %v527
    %v592 = vunpack.c.l.b16 %v528
    %v593 = vunpack.c.l.b16 %v529
    %v594 = vunpack.c.l.b16 %v530
    %v595 = vunpack.c.l.b16 %v531
    %v596 = vunpack.c.l.b16 %v532
    %v597 = vunpack.c.l.b16 %v533
    %v598 = vunpack.c.l.b16 %v534
    %v599 = vunpack.c.l.b16 %v535
    %v600 = vunpack.c.l.b16 %v536
    %v601 = vunpack.c.l.b16 %v537
    %v602 = vunpack.c.l.b16 %v538
    %v603 = vunpack.c.l.b16 %v539
    %v604 = vunpack.c.l.b16 %v540
    %v605 = vunpack.c.l.b16 %v541
    %v606 = vunpack.c.l.b16 %v542
    %v607 = vunpack.c.l.b16 %v543
    %v608 = vunpack.c.l.b16 %v544
    %v609 = vunpack.c.l.b16 %v545
    %v610 = vunpack.c.l.b16 %v546
    %v611 = vunpack.c.l.b16 %v547
    %v612 = vunpack.c.l.b16 %v548
    %v613 = vunpack.c.l.b16 %v549
    %v614 = vunpack.c.l.b16 %v550
    %v615 = vunpack.c.l.b16 %v551
    %v616 = vunpack.c.l.b16 %v552
    %v617 = vunpack.c.l.b16 %v553
    %v618 = vunpack.c.l.b16 %v554
    %v619 = vunpack.c.l.b16 %v555
    %v620 = vunpack.c.l.b16 %v556
    %v621 = vpack.c.b16 %v590, %v589
    %v622 = vpack.c.b16 %v592, %v591
    %v623 = vpack.c.b16 %v594, %v593
    %v624 = vpack.c.b16 %v596, %v595
    %v625 = vpack.c.b16 %v598, %v597
    %v626 = vpack.c.b16 %v600, %v599
    %v627 = vpack.c.b16 %v602, %v601
    %v628 = vpack.c.b16 %v604, %v603
    %v629 = vpack.c.b16 %v606, %v605
    %v630 = vpack.c.b16 %v608, %v607
    %v631 = vpack.c.b16 %v610, %v609
    %v632 = vpack.c.b16 %v612, %v611
    %v633 = vpack.c.b16 %v614, %v613
    %v634 = vpack.c.b16 %v616, %v615
    %v635 = vpack.c.b16 %v618, %v617
    %v636 = vpack.c.b16 %v620, %v619
    %v638 = vsel %vm170, %v621, 0
    %v641 = vsel %vm170, %v622, 0
    %v644 = vsel %vm170, %v623, 0
    %v647 = vsel %vm170, %v624, 0
    %v650 = vsel %vm170, %v625, 0
    %v653 = vsel %vm170, %v626, 0
    %v656 = vsel %vm170, %v627, 0
    %v659 = vsel %vm170, %v628, 0
    %v662 = vsel %vm170, %v629, 0
    %v665 = vsel %vm170, %v630, 0
    %v668 = vsel %vm170, %v631, 0
    %v671 = vsel %vm170, %v632, 0
    %v674 = vsel %vm170, %v633, 0
    %v677 = vsel %vm170, %v634, 0
    %v680 = vsel %vm170, %v635, 0
    %v683 = vsel %vm170, %v636, 0
    %685 = vmatprep.subr.bf16.mxu0 0
    %686 = vmatpush1.bf16.msra.mxu0 %v165
    %687 = vmatprep.subr.bf16.mxu0 0
    %688 = vmatpush1.bf16.msra.mxu0 %v166
    %689 = vmatprep.subr.bf16.mxu0 0
    %690 = vmatpush1.bf16.msra.mxu0 %v221
    %691 = vmatprep.subr.bf16.mxu0 0
    %692 = vmatpush1.bf16.msra.mxu0 0
    %693 = vmatprep.subr.bf16.mxu0 0
    %694 = vmatpush1.bf16.msra.mxu0 0
    %695 = vmatprep.subr.bf16.mxu0 0
    %696 = vmatpush1.bf16.msra.mxu0 0
    %697 = vmatprep.subr.bf16.mxu0 0
    %698 = vmatpush1.bf16.msra.mxu0 0
    %699 = vmatprep.subr.bf16.mxu0 0
    %700 = vmatpush1.bf16.msra.mxu0 0
    %701 = vmatprep.subr.bf16.mxu0 0
    %702 = vmatpush1.bf16.msra.mxu0 0
    %703 = vmatprep.subr.bf16.mxu0 0
    %704 = vmatpush1.bf16.msra.mxu0 0
    %705 = vmatprep.subr.bf16.mxu0 0
    %706 = vmatpush1.bf16.msra.mxu0 0
    %707 = vmatprep.subr.bf16.mxu0 0
    %708 = vmatpush1.bf16.msra.mxu0 0
    %709 = vmatprep.subr.bf16.mxu0 0
    %710 = vmatpush1.bf16.msra.mxu0 0
    %711 = vmatprep.subr.bf16.mxu0 0
    %712 = vmatpush1.bf16.msra.mxu0 0
    %713 = vmatprep.subr.bf16.mxu0 0
    %714 = vmatpush1.bf16.msra.mxu0 0
    %715 = vmatprep.subr.bf16.mxu0 0
    %716 = vmatpush1.bf16.msra.mxu0 0
    %717 = vmatprep.mubr.bf16.mxu0 0
    %718 = vmatmul.mubr.bf16.gmra.mrb[0].mxu0 %v638
    %v719 = vpop.f32.mrb[0].mxu0
    %v720 = vadd.f32 %v73, %v719
    %v721 = vpop.f32.mrb[0].mxu0
    %v722 = vpop.f32.mrb[0].mxu0
    %v723 = vadd.f32 %v73, %v722
    %v724 = vpop.f32.mrb[0].mxu0
    %725 = vmatprep.mubr.bf16.mxu0 0
    %726 = vmatmul.mubr.bf16.gmra.mrb[0].mxu0 %v641
    %v727 = vpop.f32.mrb[0].mxu0
    %v728 = vadd.f32 %v73, %v727
    %v729 = vpop.f32.mrb[0].mxu0
    %v730 = vpop.f32.mrb[0].mxu0
    %v731 = vadd.f32 %v73, %v730
    %v732 = vpop.f32.mrb[0].mxu0
    %733 = vmatprep.mubr.bf16.mxu0 0
    %734 = vmatmul.mubr.bf16.gmra.mrb[0].mxu0 %v644
    %v735 = vpop.f32.mrb[0].mxu0
    %v736 = vadd.f32 %v73, %v735
    %v737 = vpop.f32.mrb[0].mxu0
    %v738 = vpop.f32.mrb[0].mxu0
    %v739 = vadd.f32 %v73, %v738
    %v740 = vpop.f32.mrb[0].mxu0
    %741 = vmatprep.mubr.bf16.mxu0 0
    %742 = vmatmul.mubr.bf16.gmra.mrb[0].mxu0 %v647
    %v743 = vpop.f32.mrb[0].mxu0
    %v744 = vadd.f32 %v73, %v743
    %v745 = vpop.f32.mrb[0].mxu0
    %v746 = vpop.f32.mrb[0].mxu0
    %v747 = vadd.f32 %v73, %v746
    %v748 = vpop.f32.mrb[0].mxu0
    %749 = vmatprep.mubr.bf16.mxu0 0
    %750 = vmatmul.mubr.bf16.gmra.mrb[0].mxu0 %v650
    %v751 = vpop.f32.mrb[0].mxu0
    %v752 = vadd.f32 %v73, %v751
    %v753 = vpop.f32.mrb[0].mxu0
    %v754 = vpop.f32.mrb[0].mxu0
    %v755 = vadd.f32 %v73, %v754
    %v756 = vpop.f32.mrb[0].mxu0
    %757 = vmatprep.mubr.bf16.mxu0 0
    %758 = vmatmul.mubr.bf16.gmra.mrb[0].mxu0 %v653
    %v759 = vpop.f32.mrb[0].mxu0
    %v760 = vadd.f32 %v73, %v759
    %v761 = vpop.f32.mrb[0].mxu0
    %v762 = vpop.f32.mrb[0].mxu0
    %v763 = vadd.f32 %v73, %v762
    %v764 = vpop.f32.mrb[0].mxu0
    %765 = vmatprep.mubr.bf16.mxu0 0
    %766 = vmatmul.mubr.bf16.gmra.mrb[0].mxu0 %v656
    %v767 = vpop.f32.mrb[0].mxu0
    %v768 = vadd.f32 %v73, %v767
    %v769 = vpop.f32.mrb[0].mxu0
    %v770 = vpop.f32.mrb[0].mxu0
    %v771 = vadd.f32 %v73, %v770
    %v772 = vpop.f32.mrb[0].mxu0
    %773 = vmatprep.mubr.bf16.mxu0 0
    %774 = vmatmul.mubr.bf16.gmra.mrb[0].mxu0 %v659
    %v775 = vpop.f32.mrb[0].mxu0
    %v776 = vadd.f32 %v73, %v775
    %v777 = vpop.f32.mrb[0].mxu0
    %v778 = vpop.f32.mrb[0].mxu0
    %v779 = vadd.f32 %v73, %v778
    %v780 = vpop.f32.mrb[0].mxu0
    %781 = vmatprep.mubr.bf16.mxu0 0
    %782 = vmatmul.mubr.bf16.gmra.mrb[0].mxu0 %v662
    %v783 = vpop.f32.mrb[0].mxu0
    %v784 = vadd.f32 %v73, %v783
    %v785 = vpop.f32.mrb[0].mxu0
    %v786 = vpop.f32.mrb[0].mxu0
    %v787 = vadd.f32 %v73, %v786
    %v788 = vpop.f32.mrb[0].mxu0
    %789 = vmatprep.mubr.bf16.mxu0 0
    %790 = vmatmul.mubr.bf16.gmra.mrb[0].mxu0 %v665
    %v791 = vpop.f32.mrb[0].mxu0
    %v792 = vadd.f32 %v73, %v791
    %v793 = vpop.f32.mrb[0].mxu0
    %v794 = vpop.f32.mrb[0].mxu0
    %v795 = vadd.f32 %v73, %v794
    %v796 = vpop.f32.mrb[0].mxu0
    %797 = vmatprep.mubr.bf16.mxu0 0
    %798 = vmatmul.mubr.bf16.gmra.mrb[0].mxu0 %v668
    %v799 = vpop.f32.mrb[0].mxu0
    %v800 = vadd.f32 %v73, %v799
    %v801 = vpop.f32.mrb[0].mxu0
    %v802 = vpop.f32.mrb[0].mxu0
    %v803 = vadd.f32 %v73, %v802
    %v804 = vpop.f32.mrb[0].mxu0
    %805 = vmatprep.mubr.bf16.mxu0 0
    %806 = vmatmul.mubr.bf16.gmra.mrb[0].mxu0 %v671
    %v807 = vpop.f32.mrb[0].mxu0
    %v808 = vadd.f32 %v73, %v807
    %v809 = vpop.f32.mrb[0].mxu0
    %v810 = vpop.f32.mrb[0].mxu0
    %v811 = vadd.f32 %v73, %v810
    %v812 = vpop.f32.mrb[0].mxu0
    %813 = vmatprep.mubr.bf16.mxu0 0
    %814 = vmatmul.mubr.bf16.gmra.mrb[0].mxu0 %v674
    %v815 = vpop.f32.mrb[0].mxu0
    %v816 = vadd.f32 %v73, %v815
    %v817 = vpop.f32.mrb[0].mxu0
    %v818 = vpop.f32.mrb[0].mxu0
    %v819 = vadd.f32 %v73, %v818
    %v820 = vpop.f32.mrb[0].mxu0
    %821 = vmatprep.mubr.bf16.mxu0 0
    %822 = vmatmul.mubr.bf16.gmra.mrb[0].mxu0 %v677
    %v823 = vpop.f32.mrb[0].mxu0
    %v824 = vadd.f32 %v73, %v823
    %v825 = vpop.f32.mrb[0].mxu0
    %v826 = vpop.f32.mrb[0].mxu0
    %v827 = vadd.f32 %v73, %v826
    %v828 = vpop.f32.mrb[0].mxu0
    %829 = vmatprep.mubr.bf16.mxu0 0
    %830 = vmatmul.mubr.bf16.gmra.mrb[0].mxu0 %v680
    %v831 = vpop.f32.mrb[0].mxu0
    %v832 = vadd.f32 %v73, %v831
    %v833 = vpop.f32.mrb[0].mxu0
    %v834 = vpop.f32.mrb[0].mxu0
    %v835 = vadd.f32 %v73, %v834
    %v836 = vpop.f32.mrb[0].mxu0
    %837 = vmatprep.mubr.bf16.mxu0 0
    %838 = vmatmul.mubr.bf16.gmra.mrb[0].mxu0 %v683
    %v839 = vpop.f32.mrb[0].mxu0
    %v840 = vadd.f32 %v73, %v839
    %v841 = vpop.f32.mrb[0].mxu0
    %v842 = vpop.f32.mrb[0].mxu0
    %v843 = vadd.f32 %v73, %v842
    %v844 = vpop.f32.mrb[0].mxu0
    %845 = vdwg.mxu0
    %vm846 = vcmp.ge.f32.partialorder %v720, 0.0
    %vm847 = vcmp.ge.f32.partialorder %v723, 0.0
    %vm848 = vcmp.ge.f32.partialorder %v728, 0.0
    %vm849 = vcmp.ge.f32.partialorder %v731, 0.0
    %vm850 = vcmp.ge.f32.partialorder %v736, 0.0
    %vm851 = vcmp.ge.f32.partialorder %v739, 0.0
    %vm852 = vcmp.ge.f32.partialorder %v744, 0.0
    %vm853 = vcmp.ge.f32.partialorder %v747, 0.0
    %vm854 = vcmp.ge.f32.partialorder %v752, 0.0
    %vm855 = vcmp.ge.f32.partialorder %v755, 0.0
    %vm856 = vcmp.ge.f32.partialorder %v760, 0.0
    %vm857 = vcmp.ge.f32.partialorder %v763, 0.0
    %vm858 = vcmp.ge.f32.partialorder %v768, 0.0
    %vm859 = vcmp.ge.f32.partialorder %v771, 0.0
    %vm860 = vcmp.ge.f32.partialorder %v776, 0.0
    %vm861 = vcmp.ge.f32.partialorder %v779, 0.0
    %vm862 = vcmp.ge.f32.partialorder %v784, 0.0
    %vm863 = vcmp.ge.f32.partialorder %v787, 0.0
    %vm864 = vcmp.ge.f32.partialorder %v792, 0.0
    %vm865 = vcmp.ge.f32.partialorder %v795, 0.0
    %vm866 = vcmp.ge.f32.partialorder %v800, 0.0
    %vm867 = vcmp.ge.f32.partialorder %v803, 0.0
    %vm868 = vcmp.ge.f32.partialorder %v808, 0.0
    %vm869 = vcmp.ge.f32.partialorder %v811, 0.0
    %vm870 = vcmp.ge.f32.partialorder %v816, 0.0
    %vm871 = vcmp.ge.f32.partialorder %v819, 0.0
    %vm872 = vcmp.ge.f32.partialorder %v824, 0.0
    %vm873 = vcmp.ge.f32.partialorder %v827, 0.0
    %vm874 = vcmp.ge.f32.partialorder %v832, 0.0
    %vm875 = vcmp.ge.f32.partialorder %v835, 0.0
    %vm876 = vcmp.ge.f32.partialorder %v840, 0.0
    %vm877 = vcmp.ge.f32.partialorder %v843, 0.0
    %v878 = vmul.f32 %v720, 0.01
    %v879 = vmul.f32 %v723, 0.01
    %v880 = vmul.f32 %v728, 0.01
    %v881 = vmul.f32 %v731, 0.01
    %v882 = vmul.f32 %v736, 0.01
    %v883 = vmul.f32 %v739, 0.01
    %v884 = vmul.f32 %v744, 0.01
    %v885 = vmul.f32 %v747, 0.01
    %v886 = vmul.f32 %v752, 0.01
    %v887 = vmul.f32 %v755, 0.01
    %v888 = vmul.f32 %v760, 0.01
    %v889 = vmul.f32 %v763, 0.01
    %v890 = vmul.f32 %v768, 0.01
    %v891 = vmul.f32 %v771, 0.01
    %v892 = vmul.f32 %v776, 0.01
    %v893 = vmul.f32 %v779, 0.01
    %v894 = vmul.f32 %v784, 0.01
    %v895 = vmul.f32 %v787, 0.01
    %v896 = vmul.f32 %v792, 0.01
    %v897 = vmul.f32 %v795, 0.01
    %v898 = vmul.f32 %v800, 0.01
    %v899 = vmul.f32 %v803, 0.01
    %v900 = vmul.f32 %v808, 0.01
    %v901 = vmul.f32 %v811, 0.01
    %v902 = vmul.f32 %v816, 0.01
    %v903 = vmul.f32 %v819, 0.01
    %v904 = vmul.f32 %v824, 0.01
    %v905 = vmul.f32 %v827, 0.01
    %v906 = vmul.f32 %v832, 0.01
    %v907 = vmul.f32 %v835, 0.01
    %v908 = vmul.f32 %v840, 0.01
    %v909 = vmul.f32 %v843, 0.01
    %v910 = vsel %vm846, %v720, %v878
    %v911 = vsel %vm847, %v723, %v879
    %v912 = vsel %vm848, %v728, %v880
    %v913 = vsel %vm849, %v731, %v881
    %v914 = vsel %vm850, %v736, %v882
    %v915 = vsel %vm851, %v739, %v883
    %v916 = vsel %vm852, %v744, %v884
    %v917 = vsel %vm853, %v747, %v885
    %v918 = vsel %vm854, %v752, %v886
    %v919 = vsel %vm855, %v755, %v887
    %v920 = vsel %vm856, %v760, %v888
    %v921 = vsel %vm857, %v763, %v889
    %v922 = vsel %vm858, %v768, %v890
    %v923 = vsel %vm859, %v771, %v891
    %v924 = vsel %vm860, %v776, %v892
    %v925 = vsel %vm861, %v779, %v893
    %v926 = vsel %vm862, %v784, %v894
    %v927 = vsel %vm863, %v787, %v895
    %v928 = vsel %vm864, %v792, %v896
    %v929 = vsel %vm865, %v795, %v897
    %v930 = vsel %vm866, %v800, %v898
    %v931 = vsel %vm867, %v803, %v899
    %v932 = vsel %vm868, %v808, %v900
    %v933 = vsel %vm869, %v811, %v901
    %v934 = vsel %vm870, %v816, %v902
    %v935 = vsel %vm871, %v819, %v903
    %v936 = vsel %vm872, %v824, %v904
    %v937 = vsel %vm873, %v827, %v905
    %v938 = vsel %vm874, %v832, %v906
    %v939 = vsel %vm875, %v835, %v907
    %v940 = vsel %vm876, %v840, %v908
    %v941 = vsel %vm877, %v843, %v909
    %v942 = vadd.f32 %v910, %v911
    %v943 = vadd.f32 %v942, %v912
    %v944 = vadd.f32 %v943, %v913
    %v945 = vadd.f32 %v944, %v914
    %v946 = vadd.f32 %v945, %v915
    %v947 = vadd.f32 %v946, %v916
    %v948 = vadd.f32 %v947, %v917
    %v949 = vadd.f32 %v948, %v918
    %v950 = vadd.f32 %v949, %v919
    %v951 = vadd.f32 %v950, %v920
    %v952 = vadd.f32 %v951, %v921
    %v953 = vadd.f32 %v952, %v922
    %v954 = vadd.f32 %v953, %v923
    %v955 = vadd.f32 %v954, %v924
    %v956 = vadd.f32 %v955, %v925
    %v957 = vrot.slane %v956, 4
    %v958 = vadd.f32 %v956, %v957
    %v959 = vrot.slane %v958, 2
    %v960 = vadd.f32 %v958, %v959
    %v961 = vrot.slane %v960, 1
    %v962 = vadd.f32 %v960, %v961
    %v963 = vadd.f32 %v926, %v927
    %v964 = vadd.f32 %v963, %v928
    %v965 = vadd.f32 %v964, %v929
    %v966 = vadd.f32 %v965, %v930
    %v967 = vadd.f32 %v966, %v931
    %v968 = vadd.f32 %v967, %v932
    %v969 = vadd.f32 %v968, %v933
    %v970 = vadd.f32 %v969, %v934
    %v971 = vadd.f32 %v970, %v935
    %v972 = vadd.f32 %v971, %v936
    %v973 = vadd.f32 %v972, %v937
    %v974 = vadd.f32 %v973, %v938
    %v975 = vadd.f32 %v974, %v939
    %v976 = vadd.f32 %v975, %v940
    %v977 = vadd.f32 %v976, %v941
    %v978 = vrot.slane %v977, 4
    %v979 = vadd.f32 %v977, %v978
    %v980 = vrot.slane %v979, 2
    %v981 = vadd.f32 %v979, %v980
    %v982 = vrot.slane %v981, 1
    %v983 = vadd.f32 %v981, %v982
    %v984 = vadd.f32 %v522, %v962
    %v985 = vadd.f32 %v523, %v983
    %v986 = vmul.f32 %v984, 0.00390625
    %v987 = vmul.f32 %v985, 0.00390625
    %v988 = vpack.c.bf16 %v986, %v986
    %v989 = vpack.c.bf16 %v987, %v987
    %v990 = vld [vmem:[%s3] sm:$0xf]
    %v991 = vld [vmem:[%s3 + $0x4] sm:$0xf]
    %v992 = vld [vmem:[%s3 + $0x8] sm:$0xf]
    %v993 = vld [vmem:[%s3 + $0xc] sm:$0xf]
    %v994 = vld [vmem:[%s3 + $0x10] sm:$0xf]
    %v995 = vld [vmem:[%s3 + $0x14] sm:$0xf]
    %v996 = vld [vmem:[%s3 + $0x18] sm:$0xf]
    %v997 = vld [vmem:[%s3 + $0x1c] sm:$0xf]
    %v998 = vld [vmem:[%s3 + $0x20] sm:$0xf]
    %v999 = vld [vmem:[%s3 + $0x24] sm:$0xf]
    %v1000 = vld [vmem:[%s3 + $0x28] sm:$0xf]
    %v1001 = vld [vmem:[%s3 + $0x2c] sm:$0xf]
    %v1002 = vld [vmem:[%s3 + $0x30] sm:$0xf]
    %v1003 = vld [vmem:[%s3 + $0x34] sm:$0xf]
    %v1004 = vld [vmem:[%s3 + $0x38] sm:$0xf]
    %v1005 = vld [vmem:[%s3 + $0x3c] sm:$0xf]
    %v1006 = vld [vmem:[%s4] sm:$0x1]
    %v1008 = vlaneseq
    %v1009 = vshrl.u32 %v1008, 7
    %v1010 = vsub.s32 0, %v1009
    %v1011 = vrot.slane %v1006, %v1010
    %v1015 = vunpack.c.l.b16 %v988
    %v1016 = vunpack.c.l.b16 %v989
    %vm1017 = vcmask 1041409
    %v1018 = vsel %vm1017, %v1016, %v1015
    %v1019 = vpack.c.b16 %v1018, %v1018
    %v1037 = vunpack.c.l.b16 %v990
    %v1038 = vunpack.c.l.b16 %v991
    %v1039 = vunpack.c.l.b16 %v992
    %v1040 = vunpack.c.l.b16 %v993
    %v1041 = vunpack.c.l.b16 %v994
    %v1042 = vunpack.c.l.b16 %v995
    %v1043 = vunpack.c.l.b16 %v996
    %v1044 = vunpack.c.l.b16 %v997
    %v1045 = vunpack.c.l.b16 %v998
    %v1046 = vunpack.c.l.b16 %v999
    %v1047 = vunpack.c.l.b16 %v1000
    %v1048 = vunpack.c.l.b16 %v1001
    %v1049 = vunpack.c.l.b16 %v1002
    %v1050 = vunpack.c.l.b16 %v1003
    %v1051 = vunpack.c.l.b16 %v1004
    %v1052 = vunpack.c.l.b16 %v1005
    %v1053 = vpack.c.b16 %v1038, %v1037
    %v1054 = vpack.c.b16 %v1040, %v1039
    %v1055 = vpack.c.b16 %v1042, %v1041
    %v1056 = vpack.c.b16 %v1044, %v1043
    %v1057 = vpack.c.b16 %v1046, %v1045
    %v1058 = vpack.c.b16 %v1048, %v1047
    %v1059 = vpack.c.b16 %v1050, %v1049
    %v1060 = vpack.c.b16 %v1052, %v1051
    %1069 = vmatprep.subr.bf16.mxu0 0
    %1070 = vmatpush1.bf16.msra.mxu0 %v1053
    %1071 = vmatprep.subr.bf16.mxu0 0
    %1072 = vmatpush1.bf16.msra.mxu0 %v1054
    %1073 = vmatprep.subr.bf16.mxu0 0
    %1074 = vmatpush1.bf16.msra.mxu0 %v1055
    %1075 = vmatprep.subr.bf16.mxu0 0
    %1076 = vmatpush1.bf16.msra.mxu0 %v1056
    %1077 = vmatprep.subr.bf16.mxu0 0
    %1078 = vmatpush1.bf16.msra.mxu0 %v1057
    %1079 = vmatprep.subr.bf16.mxu0 0
    %1080 = vmatpush1.bf16.msra.mxu0 %v1058
    %1081 = vmatprep.subr.bf16.mxu0 0
    %1082 = vmatpush1.bf16.msra.mxu0 %v1059
    %1083 = vmatprep.subr.bf16.mxu0 0
    %1084 = vmatpush1.bf16.msra.mxu0 %v1060
    %1085 = vmatprep.subr.bf16.mxu0 0
    %1086 = vmatpush1.bf16.msra.mxu0 0
    %1087 = vmatprep.subr.bf16.mxu0 0
    %1088 = vmatpush1.bf16.msra.mxu0 0
    %1089 = vmatprep.subr.bf16.mxu0 0
    %1090 = vmatpush1.bf16.msra.mxu0 0
    %1091 = vmatprep.subr.bf16.mxu0 0
    %1092 = vmatpush1.bf16.msra.mxu0 0
    %1093 = vmatprep.subr.bf16.mxu0 0
    %1094 = vmatpush1.bf16.msra.mxu0 0
    %1095 = vmatprep.subr.bf16.mxu0 0
    %1096 = vmatpush1.bf16.msra.mxu0 0
    %1097 = vmatprep.subr.bf16.mxu0 0
    %1098 = vmatpush1.bf16.msra.mxu0 0
    %1099 = vmatprep.subr.bf16.mxu0 0
    %1100 = vmatpush1.bf16.msra.mxu0 0
    %1101 = vmatprep.mubr.bf16.mxu0 0
    %1102 = vmatmul.mubr.bf16.gmra.mrb[0].mxu0 %v1019
    %v1103 = vpop.f32.mrb[0].mxu0
    %v1104 = vadd.f32 %v1011, %v1103
    %v1105 = vpop.f32.mrb[0].mxu0
    %v1106 = vpop.f32.mrb[0].mxu0
    %v1107 = vpop.f32.mrb[0].mxu0
    %1108 = vdwg.mxu0
    %vm1109 = vcmp.ge.f32.partialorder %v1104, 0.0
    %v1110 = vmul.f32 %v1104, 0.01
    %v1111 = vsel %vm1109, %v1104, %v1110
    %1112 = vst [vmem:[#allocation2] sm:$0x3] %v1111
    %v1113 = vpack.c.bf16 %v1111, %v1111
    %v1114 = vld [vmem:[%s5] sm:$0xf]
    %v1115 = vld [vmem:[%s5 + $0x4] sm:$0xf]
    %v1116 = vld [vmem:[%s5 + $0x8] sm:$0xf]
    %v1117 = vld [vmem:[%s5 + $0xc] sm:$0xf]
    %v1118 = vld [vmem:[%s5 + $0x10] sm:$0xf]
    %v1119 = vld [vmem:[%s5 + $0x14] sm:$0xf]
    %v1120 = vld [vmem:[%s5 + $0x18] sm:$0xf]
    %v1121 = vld [vmem:[%s5 + $0x1c] sm:$0xf]
    %v1122 = vld [vmem:[%s5 + $0x20] sm:$0xf]
    %v1123 = vld [vmem:[%s5 + $0x24] sm:$0xf]
    %v1124 = vld [vmem:[%s5 + $0x28] sm:$0xf]
    %v1125 = vld [vmem:[%s5 + $0x2c] sm:$0xf]
    %v1126 = vld [vmem:[%s5 + $0x30] sm:$0xf]
    %v1127 = vld [vmem:[%s5 + $0x34] sm:$0xf]
    %v1128 = vld [vmem:[%s5 + $0x38] sm:$0xf]
    %v1129 = vld [vmem:[%s5 + $0x3c] sm:$0xf]
    %v1130 = vld [vmem:[%s6] sm:$0x1]
    %v1132 = vlaneseq
    %v1133 = vshrl.u32 %v1132, 7
    %v1134 = vsub.s32 0, %v1133
    %v1135 = vrot.slane %v1130, %v1134
    %v1153 = vunpack.c.l.b16 %v1114
    %v1154 = vunpack.c.l.b16 %v1115
    %v1155 = vunpack.c.l.b16 %v1116
    %v1156 = vunpack.c.l.b16 %v1117
    %v1157 = vunpack.c.l.b16 %v1118
    %v1158 = vunpack.c.l.b16 %v1119
    %v1159 = vunpack.c.l.b16 %v1120
    %v1160 = vunpack.c.l.b16 %v1121
    %v1161 = vunpack.c.l.b16 %v1122
    %v1162 = vunpack.c.l.b16 %v1123
    %v1163 = vunpack.c.l.b16 %v1124
    %v1164 = vunpack.c.l.b16 %v1125
    %v1165 = vunpack.c.l.b16 %v1126
    %v1166 = vunpack.c.l.b16 %v1127
    %v1167 = vunpack.c.l.b16 %v1128
    %v1168 = vunpack.c.l.b16 %v1129
    %v1169 = vpack.c.b16 %v1154, %v1153
    %v1170 = vpack.c.b16 %v1156, %v1155
    %v1171 = vpack.c.b16 %v1158, %v1157
    %v1172 = vpack.c.b16 %v1160, %v1159
    %v1173 = vpack.c.b16 %v1162, %v1161
    %v1174 = vpack.c.b16 %v1164, %v1163
    %v1175 = vpack.c.b16 %v1166, %v1165
    %v1176 = vpack.c.b16 %v1168, %v1167
    %1185 = vmatprep.subr.bf16.mxu0 0
    %1186 = vmatpush1.bf16.msra.mxu0 %v1169
    %1187 = vmatprep.subr.bf16.mxu0 0
    %1188 = vmatpush1.bf16.msra.mxu0 %v1170
    %1189 = vmatprep.subr.bf16.mxu0 0
    %1190 = vmatpush1.bf16.msra.mxu0 %v1171
    %1191 = vmatprep.subr.bf16.mxu0 0
    %1192 = vmatpush1.bf16.msra.mxu0 %v1172
    %1193 = vmatprep.subr.bf16.mxu0 0
    %1194 = vmatpush1.bf16.msra.mxu0 %v1173
    %1195 = vmatprep.subr.bf16.mxu0 0
    %1196 = vmatpush1.bf16.msra.mxu0 %v1174
    %1197 = vmatprep.subr.bf16.mxu0 0
    %1198 = vmatpush1.bf16.msra.mxu0 %v1175
    %1199 = vmatprep.subr.bf16.mxu0 0
    %1200 = vmatpush1.bf16.msra.mxu0 %v1176
    %1201 = vmatprep.subr.bf16.mxu0 0
    %1202 = vmatpush1.bf16.msra.mxu0 0
    %1203 = vmatprep.subr.bf16.mxu0 0
    %1204 = vmatpush1.bf16.msra.mxu0 0
    %1205 = vmatprep.subr.bf16.mxu0 0
    %1206 = vmatpush1.bf16.msra.mxu0 0
    %1207 = vmatprep.subr.bf16.mxu0 0
    %1208 = vmatpush1.bf16.msra.mxu0 0
    %1209 = vmatprep.subr.bf16.mxu0 0
    %1210 = vmatpush1.bf16.msra.mxu0 0
    %1211 = vmatprep.subr.bf16.mxu0 0
    %1212 = vmatpush1.bf16.msra.mxu0 0
    %1213 = vmatprep.subr.bf16.mxu0 0
    %1214 = vmatpush1.bf16.msra.mxu0 0
    %1215 = vmatprep.subr.bf16.mxu0 0
    %1216 = vmatpush1.bf16.msra.mxu0 0
    %1217 = vmatprep.mubr.bf16.mxu0 0
    %1218 = vmatmul.mubr.bf16.gmra.mrb[0].mxu0 %v1113
    %v1219 = vpop.f32.mrb[0].mxu0
    %v1220 = vadd.f32 %v1135, %v1219
    %v1221 = vpop.f32.mrb[0].mxu0
    %v1222 = vpop.f32.mrb[0].mxu0
    %v1223 = vpop.f32.mrb[0].mxu0
    %1224 = vdwg.mxu0
    %1225 = vst [vmem:[#allocation4] sm:$0x3] %v1220
    // Predicated region
    $region30: #{gateconv_forward.1} parent=1 // pred_check
      _
    $region31: #{gateconv_forward.1} parent=1 // pred_check_branch
      %1227 = sbr.rel (0) target = $region33
    $region32: #{gateconv_forward.1} parent=1 // pred_region
      %s1229 = ssub.s32 32, 32
      %1230 = vsyncadd [#allocation3], %s1229
      %s1232 = sshll.u32 [#allocation2], 4
      %s1233 = int_to_ptr.vmem [resolvable:$true] %s1232
      %1235 = dma.vmem_to_hbm [thread:$0]  %s1233, 32, %s7, [#allocation3]
    $region33: #{gateconv_forward.1} parent=1 // pred_fallthru
      _
    // Predicated region
    $region34: #{gateconv_forward.1} parent=1 // pred_check
      _
    $region35: #{gateconv_forward.1} parent=1 // pred_check_branch
      %1237 = sbr.rel (0) target = $region37
    $region36: #{gateconv_forward.1} parent=1 // pred_region
      %s1239 = ssub.s32 32, 32
      %1240 = vsyncadd [#allocation5], %s1239
      %s1242 = sshll.u32 [#allocation4], 4
      %s1243 = int_to_ptr.vmem [resolvable:$true] %s1242
      %1245 = dma.vmem_to_hbm [thread:$0]  %s1243, 32, %s8, [#allocation5]
    $region37: #{gateconv_forward.1} parent=1 // pred_fallthru
      _
    // Predicated region
    $region38: #{gateconv_forward.1} parent=1 // pred_check
      _
    $region39: #{gateconv_forward.1} parent=1 // pred_check_branch
      %1247 = sbr.rel (0) target = $region41
    $region40: #{gateconv_forward.1} parent=1 // pred_region
      %1248 = dma.done [#allocation3], 32
    $region41: #{gateconv_forward.1} parent=1 // pred_fallthru
      _
    // Predicated region
    $region42: #{gateconv_forward.1} parent=1 // pred_check
      _
    $region43: #{gateconv_forward.1} parent=1 // pred_check_branch
      %1250 = sbr.rel (0) target = $region45
    $region44: #{gateconv_forward.1} parent=1 // pred_region
      %1251 = dma.done [#allocation5], 32
    $region45: #{gateconv_forward.1} parent=1 // pred_fallthru
      _
    %1252 = vsyncpa [#allocation3], 1
    %1253 = vsyncpa [#allocation5], 1

</llo_original>
